<compile_context>
chip_gen: v6e
topology: v6e:2x2x1
jax: 0.10.0
libtpu: 0.0.40
codegen_flags: <defaults>
</compile_context>

<pallas_src>
import jax
import jax.numpy as jnp
from jax.experimental import pallas as pl
from jax.experimental.pallas import tpu as pltpu

_LANE = 128


# ----------------------------------------------------------------------------
# Variant 1: zero-copy identity (aliased no-op kernel).
# ----------------------------------------------------------------------------
def _noop_kernel(x_hbm_ref, o_hbm_ref):
    # The output buffer is aliased to the input buffer: the data is already in
    # place, so the identity forward needs no DMA and no compute at all.
    del x_hbm_ref, o_hbm_ref


def identity_encoder(x):
    """Pallas equivalent of MyIdentityEncoder.forward(x): returns x as-is."""
    return pl.pallas_call(
        _noop_kernel,
        out_shape=jax.ShapeDtypeStruct(x.shape, x.dtype),
        in_specs=[pl.BlockSpec(memory_space=pl.ANY)],   # leave in HBM
        out_specs=pl.BlockSpec(memory_space=pl.ANY),    # leave in HBM
        input_output_aliases={0: 0},                    # output IS the input
    )(x)


# ----------------------------------------------------------------------------
# Variant 2: materialized copy with lane-dense tiling (if a fresh buffer or a
# non-donated input is required).
# ----------------------------------------------------------------------------
def _copy_kernel(x_ref, o_ref):
    o_ref[...] = x_ref[...]


def _ceil_to(n, m):
    return -(-n // m) * m


def identity_encoder_copy(x, tile_bytes=2 * 1024 * 1024):
    """Identity that writes a new buffer: one HBM read + one HBM write."""
    if x.size == 0:
        return x

    itemsize = jnp.dtype(x.dtype).itemsize
    # Lane-dense rows of the flattened tensor; second-minor dim kept a
    # multiple of 8 (f32 sublane tile).
    rows = _ceil_to(_ceil_to(x.size, _LANE) // _LANE, 8)
    # Row-tile sized to ~tile_bytes; multiple of 32 also keeps bf16/int8
    # sublane packing aligned. 2 MiB tiles -> 8 MiB total double-buffered
    # in+out, under the tightest default scoped-VMEM limit (v5e: 16 MiB) and
    # well under v7x's 64 MiB physical VMEM.
    tile_rows = max(8, (tile_bytes // (_LANE * itemsize)) // 32 * 32)
    tile_rows = min(tile_rows, rows)
    rows = _ceil_to(rows, tile_rows)

    n_pad = rows * _LANE - x.size
    flat = x.reshape(-1)
    if n_pad:
        flat = jnp.pad(flat, (0, n_pad))
    x2d = flat.reshape(rows, _LANE)

    grid = rows // tile_rows
    y2d = pl.pallas_call(
        _copy_kernel,
        out_shape=jax.ShapeDtypeStruct((rows, _LANE), x.dtype),
        grid_spec=pltpu.PrefetchScalarGridSpec(
            num_scalar_prefetch=0,
            grid=(grid,),
            in_specs=[pl.BlockSpec((tile_rows, _LANE), lambda i: (i, 0))],
            out_specs=pl.BlockSpec((tile_rows, _LANE), lambda i: (i, 0)),
        ),
        compiler_params=pltpu.CompilerParams(
            # Independent row-tiles: lets v7x shard the grid over its 2 TCs.
            dimension_semantics=("parallel",),
        ),
    )(x2d)

    y = y2d.reshape(-1)
    if n_pad:
        y = y[: x.size]
    return y.reshape(x.shape)


if __name__ == "__main__":
    key = jax.random.PRNGKey(0)
    # MyIdentityEncoder has no parameters; use a small NCHW input.
    x = jax.random.normal(key, (2, 4, 16, 16), dtype=jnp.float32)

    # 1) Zero-copy identity (aliased no-op kernel).
    y0 = identity_encoder(x)
    jax.block_until_ready(y0)
    assert y0.shape == x.shape and y0.dtype == x.dtype
    assert bool(jnp.all(y0 == x))

    # 2) Realistic fused use: the encoder input is an intermediate inside a
    #    jitted model, so the alias is a true zero-HBM-traffic no-op.
    @jax.jit
    def model(v):
        h = v * 2.0
        return identity_encoder(h)

    y1 = model(x)
    jax.block_until_ready(y1)
    assert bool(jnp.all(y1 == x * 2.0))

    # 3) Materialized-copy variant (fresh output buffer), lane-dense tiling.
    y2 = identity_encoder_copy(x)
    jax.block_until_ready(y2)
    assert y2.shape == x.shape and y2.dtype == x.dtype
    assert bool(jnp.all(y2 == x))

    print("KERNEL_OK")
</pallas_src>

<mosaic_0001>
module attributes {stable_mosaic.version = 11 : i64} {
  func.func @_noop_kernel(%arg0: memref<2x4x16x16xf32, #tpu.memory_space<any>>, %arg1: memref<2x4x16x16xf32, #tpu.memory_space<any>>) attributes {dimension_semantics = [], scalar_prefetch = 0 : i64, scratch_operands = 0 : i64, tpu.core_type = #tpu.core_type<tc>} {
    return
  }
}

</mosaic_0001>

<llo_original>
// kernel: tpu_custom_call.1
$region0: #{tpu_custom_call.1}
  #allocation0 [shape = 'u32[]', space=smem, size = 0x4, offset = 0x4, fixed_abs, tag = 'smem constant byte address 0x4 - core index']
  #allocation1 [shape = 'u32[144,128]{1,0:T(1,128)}', space=vmem, size = 0x12000, scoped, tag = 'internal scratch']
  %s0 = inlined_call_operand.hbm [shape: f32[2,4,16,16], index: 0, kind: input, shape index: {}, may-alias: {0,1}]
  %s1 = inlined_call_operand.hbm [shape: f32[2,4,16,16], index: 1, kind: output, shape index: {}, may-alias: {0,1}]
  %s2 = sld [smem:[#allocation0]]
  $region2: #{tpu_custom_call.1} parent=0
    _
  %s4 = ssub.s32 1, %s2
  %s5 = scalar_select 0, %s4, %s2

</llo_original>
